<compile_context>
chip_gen: v6e
topology: v6e:2x2x1
jax: 0.10.0
libtpu: 0.0.40
codegen_flags: <defaults>
</compile_context>

<pallas_src>
import math

import jax
import jax.numpy as jnp
from jax.experimental import pallas as pl
from jax.experimental.pallas import tpu as pltpu

BN_EPS = 1e-5
LANE = 128  # all hidden widths and the output dim are padded to this

# MXU operand dtype for activations. TODO(synk): on v5e sweep feeding f32
# activations instead (no bf16 VALU there, so the cast is pure VPU overhead
# while the MXU is latency-bound); keep weights bf16 either way.
_MXU_ACT_DTYPE = jnp.bfloat16


# ---------------------------------------------------------------------------
# Kernel bodies
# ---------------------------------------------------------------------------
def _forward_body(x_f32, w1_ref, g1_ref, be1_ref, w2_ref, g2_ref, be2_ref,
                  w3_ref, b3_ref):
    """One full forward (Linear->BN->ReLU x2 -> Linear) on VMEM-resident refs."""
    inv_b = 1.0 / x_f32.shape[0]  # static batch size

    def linear_bn_relu(h, w_ref, g_ref, be_ref):
        # Linear on the MXU: bf16 operands, f32 accumulation.
        # (Hidden-layer bias omitted: it cancels exactly in train-mode BN.)
        z = jnp.dot(h.astype(_MXU_ACT_DTYPE), w_ref[...],
                    preferred_element_type=jnp.float32)
        # One-pass batch statistics (biased variance, like PyTorch train mode).
        s1 = jnp.sum(z, axis=0, keepdims=True)
        s2 = jnp.sum(z * z, axis=0, keepdims=True)
        mean = s1 * inv_b
        var = jnp.maximum(s2 * inv_b - mean * mean, 0.0)
        # Fold BN into a single scale/shift (rsqrt goes to the EUP slot).
        scale = g_ref[...] * jax.lax.rsqrt(var + BN_EPS)
        shift = be_ref[...] - mean * scale
        # ReLU. Padded lanes: z==0, gamma_pad==0, beta_pad==0 -> output 0.
        return jnp.maximum(z * scale + shift, 0.0)

    h = linear_bn_relu(x_f32, w1_ref, g1_ref, be1_ref)
    h = linear_bn_relu(h, w2_ref, g2_ref, be2_ref)
    # Final Linear (no BN / ReLU); output is a lane-dense (B, 128) block.
    return (jnp.dot(h.astype(_MXU_ACT_DTYPE), w3_ref[...],
                    preferred_element_type=jnp.float32) + b3_ref[...])


def _dqn_kernel(x_ref,
                w1_ref, g1_ref, be1_ref,
                w2_ref, g2_ref, be2_ref,
                w3_ref, b3_ref,
                out_ref):
    """Single-network forward; whole batch + params resident in VMEM."""
    x = x_ref[...].astype(jnp.float32)
    out_ref[...] = _forward_body(x, w1_ref, g1_ref, be1_ref,
                                 w2_ref, g2_ref, be2_ref,
                                 w3_ref, b3_ref).astype(out_ref.dtype)


def _dqn_double_kernel(x_ref,
                       # online network
                       w1a_ref, g1a_ref, be1a_ref,
                       w2a_ref, g2a_ref, be2a_ref,
                       w3a_ref, b3a_ref,
                       # target network
                       w1b_ref, g1b_ref, be1b_ref,
                       w2b_ref, g2b_ref, be2b_ref,
                       w3b_ref, b3b_ref,
                       out_a_ref, out_b_ref):
    """Fused online + target forward on the same state batch (one dispatch)."""
    x = x_ref[...].astype(jnp.float32)
    out_a_ref[...] = _forward_body(x, w1a_ref, g1a_ref, be1a_ref,
                                   w2a_ref, g2a_ref, be2a_ref,
                                   w3a_ref, b3a_ref).astype(out_a_ref.dtype)
    out_b_ref[...] = _forward_body(x, w1b_ref, g1b_ref, be1b_ref,
                                   w2b_ref, g2b_ref, be2b_ref,
                                   w3b_ref, b3b_ref).astype(out_b_ref.dtype)


# ---------------------------------------------------------------------------
# Wrappers
# ---------------------------------------------------------------------------
def _cost_estimate(args, out_bytes, batch, d_in, n_nets):
    """Tiny advisory cost hint so XLA schedules this custom call tightly."""
    flops_per_net = 2 * batch * (d_in * LANE + LANE * LANE + LANE * LANE)
    bytes_accessed = sum(math.prod(a.shape) * a.dtype.itemsize for a in args)
    return pl.CostEstimate(flops=flops_per_net * n_nets,
                           transcendentals=2 * LANE * n_nets,  # BN rsqrt lanes
                           bytes_accessed=int(bytes_accessed) + out_bytes)


def _param_args(params):
    return (params["w1"], params["g1"], params["be1"],
            params["w2"], params["g2"], params["be2"],
            params["w3"], params["b3"])


def estimator_network_forward(x, params):
    """x: [B, input_dimension] float32; params from init_params (pre-padded)."""
    B, d_in = x.shape
    args = (x,) + _param_args(params)
    vmem = pl.BlockSpec(memory_space=pltpu.MemorySpace.VMEM)
    out_bytes = B * LANE * 4
    out_padded = pl.pallas_call(
        _dqn_kernel,
        out_shape=jax.ShapeDtypeStruct((B, LANE), jnp.float32),
        in_specs=[vmem] * len(args),
        out_specs=vmem,
        cost_estimate=_cost_estimate(args, out_bytes, B, d_in, n_nets=1),
    )(*args)
    # Padded lanes are exactly 0 (b3 pad = 0); slice back to the true actions.
    return out_padded[:, :params["action_num"]]


def estimator_network_forward_double(x, params_online, params_target):
    """Fused Double-DQN step: one pallas_call -> (Q_online, Q_target)."""
    B, d_in = x.shape
    args = (x,) + _param_args(params_online) + _param_args(params_target)
    vmem = pl.BlockSpec(memory_space=pltpu.MemorySpace.VMEM)
    out_bytes = 2 * B * LANE * 4
    q_on_p, q_tg_p = pl.pallas_call(
        _dqn_double_kernel,
        out_shape=(jax.ShapeDtypeStruct((B, LANE), jnp.float32),
                   jax.ShapeDtypeStruct((B, LANE), jnp.float32)),
        in_specs=[vmem] * len(args),
        out_specs=(vmem, vmem),
        cost_estimate=_cost_estimate(args, out_bytes, B, d_in, n_nets=2),
    )(*args)
    a_on = params_online["action_num"]
    a_tg = params_target["action_num"]
    return q_on_p[:, :a_on], q_tg_p[:, :a_tg]


# ---------------------------------------------------------------------------
# Parameter init (all padding done here, once, not per forward call)
# ---------------------------------------------------------------------------
def init_params(key, input_dimension, mlp_layers, action_num):
    """Deterministic init matching the module's shapes, pre-padded for TPU.
    Linear weights: xavier_uniform over logical (fan_in, fan_out), zero-padded
    to lane-dense shapes and stored bf16 for the MXU. Biases: PyTorch default
    U(-1/sqrt(fan_in), +1/sqrt(fan_in)), zero-padded (hidden biases are kept
    only for the reference; they cancel in train-mode BN). BatchNorm: gamma=1 /
    beta=0 on logical lanes, 0 on padded lanes."""
    dims = [input_dimension] + list(mlp_layers) + [action_num]
    padded = [input_dimension] + [LANE] * (len(dims) - 1)
    params = {"action_num": action_num}
    for i in range(len(dims) - 1):
        fan_in, fan_out = dims[i], dims[i + 1]
        p_in, p_out = padded[i], padded[i + 1]
        key, kw, kb = jax.random.split(key, 3)
        bound_w = math.sqrt(6.0 / (fan_in + fan_out))
        w = jax.random.uniform(kw, (fan_in, fan_out), jnp.float32,
                               minval=-bound_w, maxval=bound_w)
        bound_b = 1.0 / math.sqrt(fan_in)
        b = jax.random.uniform(kb, (1, fan_out), jnp.float32,
                               minval=-bound_b, maxval=bound_b)
        w = jnp.pad(w, ((0, p_in - fan_in), (0, p_out - fan_out)))
        b = jnp.pad(b, ((0, 0), (0, p_out - fan_out)))
        params[f"w{i + 1}"] = w.astype(jnp.bfloat16)  # bf16 MXU operands
        params[f"b{i + 1}"] = b                       # f32 (hidden b only used by ref)
        if i < len(dims) - 2:  # hidden layers have BatchNorm
            g = jnp.pad(jnp.ones((1, fan_out), jnp.float32),
                        ((0, 0), (0, p_out - fan_out)))   # gamma_pad = 0
            be = jnp.zeros((1, p_out), jnp.float32)        # beta_pad  = 0
            params[f"g{i + 1}"] = g
            params[f"be{i + 1}"] = be
    return params


def reference_forward(x, params):
    """Pure-JAX reference of the same forward pass (train-mode BN), including
    the hidden-layer biases exactly as PyTorch applies them (they cancel in
    BN). Operates on the padded params; padded lanes stay exactly 0."""
    h = x
    for i in (1, 2):
        z = jnp.dot(h.astype(jnp.bfloat16), params[f"w{i}"],
                    preferred_element_type=jnp.float32) + params[f"b{i}"]
        mean = jnp.mean(z, axis=0, keepdims=True)
        var = jnp.mean((z - mean) ** 2, axis=0, keepdims=True)
        zn = (z - mean) / jnp.sqrt(var + BN_EPS)
        h = jnp.maximum(zn * params[f"g{i}"] + params[f"be{i}"], 0.0)
    out = jnp.dot(h.astype(jnp.bfloat16), params["w3"],
                  preferred_element_type=jnp.float32) + params["b3"]
    return out[:, :params["action_num"]]


if __name__ == "__main__":
    # Small shapes consistent with the module:
    #   batch=8, input_dimension=64, mlp_layers=[32, 32], action_num=4
    B, input_dimension, mlp_layers, action_num = 8, 64, [32, 32], 4

    key = jax.random.PRNGKey(0)
    key, kx, kp_online, kp_target = jax.random.split(key, 4)
    x = jax.random.normal(kx, (B, input_dimension), jnp.float32)

    params_online = init_params(kp_online, input_dimension, mlp_layers, action_num)
    params_target = init_params(kp_target, input_dimension, mlp_layers, action_num)

    # Fused online + target forward: one pallas_call, two Q tensors.
    q_online, q_target = estimator_network_forward_double(
        x, params_online, params_target)
    q_online, q_target = jax.block_until_ready((q_online, q_target))

    ref_online = reference_forward(x, params_online)
    ref_target = reference_forward(x, params_target)
    assert q_online.shape == (B, action_num)
    assert q_target.shape == (B, action_num)
    assert jnp.allclose(q_online, ref_online, atol=2e-3, rtol=2e-3), "online mismatch"
    assert jnp.allclose(q_target, ref_target, atol=2e-3, rtol=2e-3), "target mismatch"

    # Single-network path (same kernel body, one weight set).
    q_single = jax.block_until_ready(estimator_network_forward(x, params_online))
    assert jnp.allclose(q_single, ref_online, atol=2e-3, rtol=2e-3), "single mismatch"

    print("KERNEL_OK")
</pallas_src>

<mosaic_0001>
module attributes {stable_mosaic.version = 11 : i64} {
  func.func @_dqn_double_kernel(%arg0: memref<8x64xf32, #tpu.memory_space<vmem>>, %arg1: memref<64x128xbf16, #tpu.memory_space<vmem>>, %arg2: memref<1x128xf32, #tpu.memory_space<vmem>>, %arg3: memref<1x128xf32, #tpu.memory_space<vmem>>, %arg4: memref<128x128xbf16, #tpu.memory_space<vmem>>, %arg5: memref<1x128xf32, #tpu.memory_space<vmem>>, %arg6: memref<1x128xf32, #tpu.memory_space<vmem>>, %arg7: memref<128x128xbf16, #tpu.memory_space<vmem>>, %arg8: memref<1x128xf32, #tpu.memory_space<vmem>>, %arg9: memref<64x128xbf16, #tpu.memory_space<vmem>>, %arg10: memref<1x128xf32, #tpu.memory_space<vmem>>, %arg11: memref<1x128xf32, #tpu.memory_space<vmem>>, %arg12: memref<128x128xbf16, #tpu.memory_space<vmem>>, %arg13: memref<1x128xf32, #tpu.memory_space<vmem>>, %arg14: memref<1x128xf32, #tpu.memory_space<vmem>>, %arg15: memref<128x128xbf16, #tpu.memory_space<vmem>>, %arg16: memref<1x128xf32, #tpu.memory_space<vmem>>, %arg17: memref<8x128xf32, #tpu.memory_space<vmem>>, %arg18: memref<8x128xf32, #tpu.memory_space<vmem>>) attributes {dimension_semantics = [], scalar_prefetch = 0 : i64, scratch_operands = 0 : i64, tpu.core_type = #tpu.core_type<tc>} {
    %c0 = arith.constant 0 : index
    %c0_0 = arith.constant 0 : index
    %0 = vector.load %arg0[%c0, %c0_0] : memref<8x64xf32, #tpu.memory_space<vmem>>, vector<8x64xf32>
    %1 = arith.truncf %0 : vector<8x64xf32> to vector<8x64xbf16>
    %c0_1 = arith.constant 0 : index
    %c0_2 = arith.constant 0 : index
    %2 = vector.load %arg1[%c0_1, %c0_2] : memref<64x128xbf16, #tpu.memory_space<vmem>>, vector<64x128xbf16>
    %cst = arith.constant dense<0.000000e+00> : vector<8x128xf32>
    %3 = tpu.matmul %1, %2, %cst {dimension_numbers = #tpu.dot_dimension_numbers<[1], [0], [0], [1], [0, 0, 1, 1], [], []>} : vector<8x64xbf16>, vector<64x128xbf16>, vector<8x128xf32> -> vector<8x128xf32>
    %cst_3 = arith.constant dense<0.000000e+00> : vector<128xf32>
    %4 = vector.multi_reduction <add>, %3, %cst_3 [0] : vector<8x128xf32> to vector<128xf32>
    %5 = vector.shape_cast %4 : vector<128xf32> to vector<1x128xf32>
    %6 = arith.mulf %3, %3 : vector<8x128xf32>
    %cst_4 = arith.constant dense<0.000000e+00> : vector<128xf32>
    %7 = vector.multi_reduction <add>, %6, %cst_4 [0] : vector<8x128xf32> to vector<128xf32>
    %8 = vector.shape_cast %7 : vector<128xf32> to vector<1x128xf32>
    %cst_5 = arith.constant 1.250000e-01 : f32
    %9 = vector.broadcast %cst_5 : f32 to vector<1x128xf32>
    %10 = arith.mulf %5, %9 : vector<1x128xf32>
    %cst_6 = arith.constant 1.250000e-01 : f32
    %11 = vector.broadcast %cst_6 : f32 to vector<1x128xf32>
    %12 = arith.mulf %8, %11 : vector<1x128xf32>
    %13 = arith.mulf %10, %10 : vector<1x128xf32>
    %14 = arith.subf %12, %13 : vector<1x128xf32>
    %cst_7 = arith.constant 0.000000e+00 : f32
    %15 = vector.broadcast %cst_7 : f32 to vector<1x128xf32>
    %16 = arith.maximumf %14, %15 : vector<1x128xf32>
    %c0_8 = arith.constant 0 : index
    %c0_9 = arith.constant 0 : index
    %17 = vector.load %arg2[%c0_8, %c0_9] : memref<1x128xf32, #tpu.memory_space<vmem>>, vector<1x128xf32>
    %cst_10 = arith.constant 9.99999974E-6 : f32
    %18 = vector.broadcast %cst_10 : f32 to vector<1x128xf32>
    %19 = arith.addf %16, %18 : vector<1x128xf32>
    %20 = math.rsqrt %19 : vector<1x128xf32>
    %21 = arith.mulf %17, %20 : vector<1x128xf32>
    %c0_11 = arith.constant 0 : index
    %c0_12 = arith.constant 0 : index
    %22 = vector.load %arg3[%c0_11, %c0_12] : memref<1x128xf32, #tpu.memory_space<vmem>>, vector<1x128xf32>
    %23 = arith.mulf %10, %21 : vector<1x128xf32>
    %24 = arith.subf %22, %23 : vector<1x128xf32>
    %25 = vector.broadcast %21 : vector<1x128xf32> to vector<8x128xf32>
    %26 = arith.mulf %3, %25 : vector<8x128xf32>
    %27 = vector.broadcast %24 : vector<1x128xf32> to vector<8x128xf32>
    %28 = arith.addf %26, %27 : vector<8x128xf32>
    %cst_13 = arith.constant 0.000000e+00 : f32
    %29 = vector.broadcast %cst_13 : f32 to vector<8x128xf32>
    %30 = arith.maximumf %28, %29 : vector<8x128xf32>
    %31 = arith.truncf %30 : vector<8x128xf32> to vector<8x128xbf16>
    %c0_14 = arith.constant 0 : index
    %c0_15 = arith.constant 0 : index
    %32 = vector.load %arg4[%c0_14, %c0_15] : memref<128x128xbf16, #tpu.memory_space<vmem>>, vector<128x128xbf16>
    %cst_16 = arith.constant dense<0.000000e+00> : vector<8x128xf32>
    %33 = tpu.matmul %31, %32, %cst_16 {dimension_numbers = #tpu.dot_dimension_numbers<[1], [0], [0], [1], [0, 0, 1, 1], [], []>} : vector<8x128xbf16>, vector<128x128xbf16>, vector<8x128xf32> -> vector<8x128xf32>
    %cst_17 = arith.constant dense<0.000000e+00> : vector<128xf32>
    %34 = vector.multi_reduction <add>, %33, %cst_17 [0] : vector<8x128xf32> to vector<128xf32>
    %35 = vector.shape_cast %34 : vector<128xf32> to vector<1x128xf32>
    %36 = arith.mulf %33, %33 : vector<8x128xf32>
    %cst_18 = arith.constant dense<0.000000e+00> : vector<128xf32>
    %37 = vector.multi_reduction <add>, %36, %cst_18 [0] : vector<8x128xf32> to vector<128xf32>
    %38 = vector.shape_cast %37 : vector<128xf32> to vector<1x128xf32>
    %cst_19 = arith.constant 1.250000e-01 : f32
    %39 = vector.broadcast %cst_19 : f32 to vector<1x128xf32>
    %40 = arith.mulf %35, %39 : vector<1x128xf32>
    %cst_20 = arith.constant 1.250000e-01 : f32
    %41 = vector.broadcast %cst_20 : f32 to vector<1x128xf32>
    %42 = arith.mulf %38, %41 : vector<1x128xf32>
    %43 = arith.mulf %40, %40 : vector<1x128xf32>
    %44 = arith.subf %42, %43 : vector<1x128xf32>
    %cst_21 = arith.constant 0.000000e+00 : f32
    %45 = vector.broadcast %cst_21 : f32 to vector<1x128xf32>
    %46 = arith.maximumf %44, %45 : vector<1x128xf32>
    %c0_22 = arith.constant 0 : index
    %c0_23 = arith.constant 0 : index
    %47 = vector.load %arg5[%c0_22, %c0_23] : memref<1x128xf32, #tpu.memory_space<vmem>>, vector<1x128xf32>
    %cst_24 = arith.constant 9.99999974E-6 : f32
    %48 = vector.broadcast %cst_24 : f32 to vector<1x128xf32>
    %49 = arith.addf %46, %48 : vector<1x128xf32>
    %50 = math.rsqrt %49 : vector<1x128xf32>
    %51 = arith.mulf %47, %50 : vector<1x128xf32>
    %c0_25 = arith.constant 0 : index
    %c0_26 = arith.constant 0 : index
    %52 = vector.load %arg6[%c0_25, %c0_26] : memref<1x128xf32, #tpu.memory_space<vmem>>, vector<1x128xf32>
    %53 = arith.mulf %40, %51 : vector<1x128xf32>
    %54 = arith.subf %52, %53 : vector<1x128xf32>
    %55 = vector.broadcast %51 : vector<1x128xf32> to vector<8x128xf32>
    %56 = arith.mulf %33, %55 : vector<8x128xf32>
    %57 = vector.broadcast %54 : vector<1x128xf32> to vector<8x128xf32>
    %58 = arith.addf %56, %57 : vector<8x128xf32>
    %cst_27 = arith.constant 0.000000e+00 : f32
    %59 = vector.broadcast %cst_27 : f32 to vector<8x128xf32>
    %60 = arith.maximumf %58, %59 : vector<8x128xf32>
    %61 = arith.truncf %60 : vector<8x128xf32> to vector<8x128xbf16>
    %c0_28 = arith.constant 0 : index
    %c0_29 = arith.constant 0 : index
    %62 = vector.load %arg7[%c0_28, %c0_29] : memref<128x128xbf16, #tpu.memory_space<vmem>>, vector<128x128xbf16>
    %cst_30 = arith.constant dense<0.000000e+00> : vector<8x128xf32>
    %63 = tpu.matmul %61, %62, %cst_30 {dimension_numbers = #tpu.dot_dimension_numbers<[1], [0], [0], [1], [0, 0, 1, 1], [], []>} : vector<8x128xbf16>, vector<128x128xbf16>, vector<8x128xf32> -> vector<8x128xf32>
    %c0_31 = arith.constant 0 : index
    %c0_32 = arith.constant 0 : index
    %64 = vector.load %arg8[%c0_31, %c0_32] : memref<1x128xf32, #tpu.memory_space<vmem>>, vector<1x128xf32>
    %65 = vector.broadcast %64 : vector<1x128xf32> to vector<8x128xf32>
    %66 = arith.addf %63, %65 : vector<8x128xf32>
    %c0_33 = arith.constant 0 : index
    %c0_34 = arith.constant 0 : index
    %67 = vector.load %arg17[%c0_33, %c0_34] : memref<8x128xf32, #tpu.memory_space<vmem>>, vector<8x128xf32>
    tpu.vector_store %arg17[%c0_33, %c0_34], %66 {strides = array<i32>} : memref<8x128xf32, #tpu.memory_space<vmem>>, vector<8x128xf32>,
    %68 = arith.truncf %0 : vector<8x64xf32> to vector<8x64xbf16>
    %c0_35 = arith.constant 0 : index
    %c0_36 = arith.constant 0 : index
    %69 = vector.load %arg9[%c0_35, %c0_36] : memref<64x128xbf16, #tpu.memory_space<vmem>>, vector<64x128xbf16>
    %cst_37 = arith.constant dense<0.000000e+00> : vector<8x128xf32>
    %70 = tpu.matmul %68, %69, %cst_37 {dimension_numbers = #tpu.dot_dimension_numbers<[1], [0], [0], [1], [0, 0, 1, 1], [], []>} : vector<8x64xbf16>, vector<64x128xbf16>, vector<8x128xf32> -> vector<8x128xf32>
    %cst_38 = arith.constant dense<0.000000e+00> : vector<128xf32>
    %71 = vector.multi_reduction <add>, %70, %cst_38 [0] : vector<8x128xf32> to vector<128xf32>
    %72 = vector.shape_cast %71 : vector<128xf32> to vector<1x128xf32>
    %73 = arith.mulf %70, %70 : vector<8x128xf32>
    %cst_39 = arith.constant dense<0.000000e+00> : vector<128xf32>
    %74 = vector.multi_reduction <add>, %73, %cst_39 [0] : vector<8x128xf32> to vector<128xf32>
    %75 = vector.shape_cast %74 : vector<128xf32> to vector<1x128xf32>
    %cst_40 = arith.constant 1.250000e-01 : f32
    %76 = vector.broadcast %cst_40 : f32 to vector<1x128xf32>
    %77 = arith.mulf %72, %76 : vector<1x128xf32>
    %cst_41 = arith.constant 1.250000e-01 : f32
    %78 = vector.broadcast %cst_41 : f32 to vector<1x128xf32>
    %79 = arith.mulf %75, %78 : vector<1x128xf32>
    %80 = arith.mulf %77, %77 : vector<1x128xf32>
    %81 = arith.subf %79, %80 : vector<1x128xf32>
    %cst_42 = arith.constant 0.000000e+00 : f32
    %82 = vector.broadcast %cst_42 : f32 to vector<1x128xf32>
    %83 = arith.maximumf %81, %82 : vector<1x128xf32>
    %c0_43 = arith.constant 0 : index
    %c0_44 = arith.constant 0 : index
    %84 = vector.load %arg10[%c0_43, %c0_44] : memref<1x128xf32, #tpu.memory_space<vmem>>, vector<1x128xf32>
    %cst_45 = arith.constant 9.99999974E-6 : f32
    %85 = vector.broadcast %cst_45 : f32 to vector<1x128xf32>
    %86 = arith.addf %83, %85 : vector<1x128xf32>
    %87 = math.rsqrt %86 : vector<1x128xf32>
    %88 = arith.mulf %84, %87 : vector<1x128xf32>
    %c0_46 = arith.constant 0 : index
    %c0_47 = arith.constant 0 : index
    %89 = vector.load %arg11[%c0_46, %c0_47] : memref<1x128xf32, #tpu.memory_space<vmem>>, vector<1x128xf32>
    %90 = arith.mulf %77, %88 : vector<1x128xf32>
    %91 = arith.subf %89, %90 : vector<1x128xf32>
    %92 = vector.broadcast %88 : vector<1x128xf32> to vector<8x128xf32>
    %93 = arith.mulf %70, %92 : vector<8x128xf32>
    %94 = vector.broadcast %91 : vector<1x128xf32> to vector<8x128xf32>
    %95 = arith.addf %93, %94 : vector<8x128xf32>
    %cst_48 = arith.constant 0.000000e+00 : f32
    %96 = vector.broadcast %cst_48 : f32 to vector<8x128xf32>
    %97 = arith.maximumf %95, %96 : vector<8x128xf32>
    %98 = arith.truncf %97 : vector<8x128xf32> to vector<8x128xbf16>
    %c0_49 = arith.constant 0 : index
    %c0_50 = arith.constant 0 : index
    %99 = vector.load %arg12[%c0_49, %c0_50] : memref<128x128xbf16, #tpu.memory_space<vmem>>, vector<128x128xbf16>
    %cst_51 = arith.constant dense<0.000000e+00> : vector<8x128xf32>
    %100 = tpu.matmul %98, %99, %cst_51 {dimension_numbers = #tpu.dot_dimension_numbers<[1], [0], [0], [1], [0, 0, 1, 1], [], []>} : vector<8x128xbf16>, vector<128x128xbf16>, vector<8x128xf32> -> vector<8x128xf32>
    %cst_52 = arith.constant dense<0.000000e+00> : vector<128xf32>
    %101 = vector.multi_reduction <add>, %100, %cst_52 [0] : vector<8x128xf32> to vector<128xf32>
    %102 = vector.shape_cast %101 : vector<128xf32> to vector<1x128xf32>
    %103 = arith.mulf %100, %100 : vector<8x128xf32>
    %cst_53 = arith.constant dense<0.000000e+00> : vector<128xf32>
    %104 = vector.multi_reduction <add>, %103, %cst_53 [0] : vector<8x128xf32> to vector<128xf32>
    %105 = vector.shape_cast %104 : vector<128xf32> to vector<1x128xf32>
    %cst_54 = arith.constant 1.250000e-01 : f32
    %106 = vector.broadcast %cst_54 : f32 to vector<1x128xf32>
    %107 = arith.mulf %102, %106 : vector<1x128xf32>
    %cst_55 = arith.constant 1.250000e-01 : f32
    %108 = vector.broadcast %cst_55 : f32 to vector<1x128xf32>
    %109 = arith.mulf %105, %108 : vector<1x128xf32>
    %110 = arith.mulf %107, %107 : vector<1x128xf32>
    %111 = arith.subf %109, %110 : vector<1x128xf32>
    %cst_56 = arith.constant 0.000000e+00 : f32
    %112 = vector.broadcast %cst_56 : f32 to vector<1x128xf32>
    %113 = arith.maximumf %111, %112 : vector<1x128xf32>
    %c0_57 = arith.constant 0 : index
    %c0_58 = arith.constant 0 : index
    %114 = vector.load %arg13[%c0_57, %c0_58] : memref<1x128xf32, #tpu.memory_space<vmem>>, vector<1x128xf32>
    %cst_59 = arith.constant 9.99999974E-6 : f32
    %115 = vector.broadcast %cst_59 : f32 to vector<1x128xf32>
    %116 = arith.addf %113, %115 : vector<1x128xf32>
    %117 = math.rsqrt %116 : vector<1x128xf32>
    %118 = arith.mulf %114, %117 : vector<1x128xf32>
    %c0_60 = arith.constant 0 : index
    %c0_61 = arith.constant 0 : index
    %119 = vector.load %arg14[%c0_60, %c0_61] : memref<1x128xf32, #tpu.memory_space<vmem>>, vector<1x128xf32>
    %120 = arith.mulf %107, %118 : vector<1x128xf32>
    %121 = arith.subf %119, %120 : vector<1x128xf32>
    %122 = vector.broadcast %118 : vector<1x128xf32> to vector<8x128xf32>
    %123 = arith.mulf %100, %122 : vector<8x128xf32>
    %124 = vector.broadcast %121 : vector<1x128xf32> to vector<8x128xf32>
    %125 = arith.addf %123, %124 : vector<8x128xf32>
    %cst_62 = arith.constant 0.000000e+00 : f32
    %126 = vector.broadcast %cst_62 : f32 to vector<8x128xf32>
    %127 = arith.maximumf %125, %126 : vector<8x128xf32>
    %128 = arith.truncf %127 : vector<8x128xf32> to vector<8x128xbf16>
    %c0_63 = arith.constant 0 : index
    %c0_64 = arith.constant 0 : index
    %129 = vector.load %arg15[%c0_63, %c0_64] : memref<128x128xbf16, #tpu.memory_space<vmem>>, vector<128x128xbf16>
    %cst_65 = arith.constant dense<0.000000e+00> : vector<8x128xf32>
    %130 = tpu.matmul %128, %129, %cst_65 {dimension_numbers = #tpu.dot_dimension_numbers<[1], [0], [0], [1], [0, 0, 1, 1], [], []>} : vector<8x128xbf16>, vector<128x128xbf16>, vector<8x128xf32> -> vector<8x128xf32>
    %c0_66 = arith.constant 0 : index
    %c0_67 = arith.constant 0 : index
    %131 = vector.load %arg16[%c0_66, %c0_67] : memref<1x128xf32, #tpu.memory_space<vmem>>, vector<1x128xf32>
    %132 = vector.broadcast %131 : vector<1x128xf32> to vector<8x128xf32>
    %133 = arith.addf %130, %132 : vector<8x128xf32>
    %c0_68 = arith.constant 0 : index
    %c0_69 = arith.constant 0 : index
    %134 = vector.load %arg18[%c0_68, %c0_69] : memref<8x128xf32, #tpu.memory_space<vmem>>, vector<8x128xf32>
    tpu.vector_store %arg18[%c0_68, %c0_69], %133 {strides = array<i32>} : memref<8x128xf32, #tpu.memory_space<vmem>>, vector<8x128xf32>,
    return
  }
}

</mosaic_0001>

<llo_original>
// kernel: tpu_custom_call.1
$region0: #{tpu_custom_call.1}
  #allocation0 [shape = 'u32[]', space=smem, size = 0x4, offset = 0x4, fixed_abs, tag = 'smem constant byte address 0x4 - core index']
  #allocation1 [shape = 'u32[144,128]{1,0:T(1,128)}', space=vmem, size = 0x12000, scoped, tag = 'internal scratch']
  %s0 = inlined_call_operand.hbm [shape: f32[8,64], index: 0, kind: input, shape index: {}]
  %s1 = inlined_call_operand.hbm [shape: bf16[64,128], index: 1, kind: input, shape index: {}]
  %s2 = inlined_call_operand.vmem [shape: f32[1,128], index: 2, kind: input, shape index: {}]
  %s3 = inlined_call_operand.vmem [shape: f32[1,128], index: 3, kind: input, shape index: {}]
  %s4 = inlined_call_operand.hbm [shape: bf16[128,128], index: 4, kind: input, shape index: {}]
  %s5 = inlined_call_operand.vmem [shape: f32[1,128], index: 5, kind: input, shape index: {}]
  %s6 = inlined_call_operand.vmem [shape: f32[1,128], index: 6, kind: input, shape index: {}]
  %s7 = inlined_call_operand.hbm [shape: bf16[128,128], index: 7, kind: input, shape index: {}]
  %s8 = inlined_call_operand.vmem [shape: f32[1,128], index: 8, kind: input, shape index: {}]
  %s9 = inlined_call_operand.hbm [shape: bf16[64,128], index: 9, kind: input, shape index: {}]
  %s10 = inlined_call_operand.vmem [shape: f32[1,128], index: 10, kind: input, shape index: {}]
  %s11 = inlined_call_operand.vmem [shape: f32[1,128], index: 11, kind: input, shape index: {}]
  %s12 = inlined_call_operand.hbm [shape: bf16[128,128], index: 12, kind: input, shape index: {}]
  %s13 = inlined_call_operand.vmem [shape: f32[1,128], index: 13, kind: input, shape index: {}]
  %s14 = inlined_call_operand.vmem [shape: f32[1,128], index: 14, kind: input, shape index: {}]
  %s15 = inlined_call_operand.hbm [shape: bf16[128,128], index: 15, kind: input, shape index: {}]
  %s16 = inlined_call_operand.vmem [shape: f32[1,128], index: 16, kind: input, shape index: {}]
  %s17 = inlined_call_operand.hbm [shape: f32[8,128], index: 17, kind: output, shape index: {0}]
  %s18 = inlined_call_operand.hbm [shape: f32[8,128], index: 18, kind: output, shape index: {1}]
  %19 = xla_tuple %s17, %s18
  %s20 = sld [smem:[#allocation0]]
  $region114: #{tpu_custom_call.1} parent=0
    _
  %s22 = ssub.s32 1, %s20
  %s23 = scalar_select 0, %s22, %s20
  $region1: #{tpu_custom_call.1} parent=0
    #allocation2 [shape = 'u8[4096]{0}', space=vmem, size = 0x1000, scoped, tag = 'input window, operand 0, single buffered']
    #allocation3 [shape = 's32[1]{0}', space=sflag, size = 0x4, scoped, tag = 'scoped memory for tpu_custom_call.1']
    #allocation4 [shape = 's32[1]{0}', space=sflag, size = 0x4, scoped, tag = 'scoped memory for tpu_custom_call.1']
    #allocation5 [shape = 'u8[16384]{0}', space=vmem, size = 0x4000, scoped, tag = 'input window, operand 1, single buffered']
    #allocation6 [shape = 's32[1]{0}', space=sflag, size = 0x4, scoped, tag = 'scoped memory for tpu_custom_call.1']
    #allocation7 [shape = 'u8[32768]{0}', space=vmem, size = 0x8000, scoped, tag = 'input window, operand 4, single buffered']
    #allocation8 [shape = 'u8[32768]{0}', space=vmem, size = 0x8000, scoped, tag = 'input window, operand 7, single buffered']
    #allocation9 [shape = 's32[1]{0}', space=sflag, size = 0x4, scoped, tag = 'scoped memory for tpu_custom_call.1']
    #allocation10 [shape = 'u8[16384]{0}', space=vmem, size = 0x4000, scoped, tag = 'input window, operand 9, single buffered']
    #allocation11 [shape = 'u8[32768]{0}', space=vmem, size = 0x8000, scoped, tag = 'input window, operand 12, single buffered']
    #allocation12 [shape = 's32[1]{0}', space=sflag, size = 0x4, scoped, tag = 'scoped memory for tpu_custom_call.1']
    #allocation13 [shape = 'u8[32768]{0}', space=vmem, size = 0x8000, scoped, tag = 'input window, operand 15, single buffered']
    #allocation14 [shape = 'u8[4096]{0}', space=vmem, size = 0x1000, scoped, tag = 'output window, operand 0, single buffered']
    #allocation15 [shape = 'u8[4096]{0}', space=vmem, size = 0x1000, scoped, tag = 'output window, operand 1, single buffered']
    #allocation16 [shape = 's32[1]{0}', space=sflag, size = 0x4, scoped, tag = 'scoped memory for tpu_custom_call.1']
    %24 = vsyncpa [#allocation3], 0
    %25 = vsyncpa [#allocation6], 0
    %26 = vsyncpa [#allocation9], 0
    %27 = vsyncpa [#allocation12], 0
    %28 = vsyncpa [#allocation4], 0
    %29 = vsyncpa [#allocation16], 0
    // Predicated region
    $region2: #{tpu_custom_call.1} parent=1 // pred_check
      _
    $region3: #{tpu_custom_call.1} parent=1 // pred_check_branch
      %31 = sbr.rel (0) target = $region5
    $region4: #{tpu_custom_call.1} parent=1 // pred_region
      %s33 = ssub.s32 128, 128
      %34 = vsyncadd [#allocation3], %s33
      %s36 = sshll.u32 [#allocation2], 4
      %s37 = int_to_ptr.vmem [resolvable:$true] %s36
      %39 = dma.hbm_to_vmem [thread:$0]  %s0, 128, %s37, [#allocation3]
    $region5: #{tpu_custom_call.1} parent=1 // pred_fallthru
      _
    // Predicated region
    $region6: #{tpu_custom_call.1} parent=1 // pred_check
      _
    $region7: #{tpu_custom_call.1} parent=1 // pred_check_branch
      %41 = sbr.rel (0) target = $region9
    $region8: #{tpu_custom_call.1} parent=1 // pred_region
      %s43 = ssub.s32 512, 512
      %44 = vsyncadd [#allocation6], %s43
      %s45 = sshll.u32 [#allocation5], 4
      %s46 = int_to_ptr.vmem [resolvable:$true] %s45
      %51 = dma.hbm_to_vmem [thread:$0]  %s1, 512, %s46, [#allocation6], 64, 64, 4
    $region9: #{tpu_custom_call.1} parent=1 // pred_fallthru
      _
    // Predicated region
    $region10: #{tpu_custom_call.1} parent=1 // pred_check
      _
    $region11: #{tpu_custom_call.1} parent=1 // pred_check_branch
      %53 = sbr.rel (0) target = $region13
    $region12: #{tpu_custom_call.1} parent=1 // pred_region
      _
    $region13: #{tpu_custom_call.1} parent=1 // pred_fallthru
      _
    // Predicated region
    $region14: #{tpu_custom_call.1} parent=1 // pred_check
      _
    $region15: #{tpu_custom_call.1} parent=1 // pred_check_branch
      %55 = sbr.rel (0) target = $region17
    $region16: #{tpu_custom_call.1} parent=1 // pred_region
      _
    $region17: #{tpu_custom_call.1} parent=1 // pred_fallthru
      _
    // Predicated region
    $region18: #{tpu_custom_call.1} parent=1 // pred_check
      _
    $region19: #{tpu_custom_call.1} parent=1 // pred_check_branch
      %57 = sbr.rel (0) target = $region21
    $region20: #{tpu_custom_call.1} parent=1 // pred_region
      %s59 = ssub.s32 1024, 1024
      %60 = vsyncadd [#allocation6], %s59
      %s61 = sshll.u32 [#allocation7], 4
      %s62 = int_to_ptr.vmem [resolvable:$true] %s61
      %67 = dma.hbm_to_vmem [thread:$0]  %s4, 1024, %s62, [#allocation6], 64, 64, 4
    $region21: #{tpu_custom_call.1} parent=1 // pred_fallthru
      _
    // Predicated region
    $region22: #{tpu_custom_call.1} parent=1 // pred_check
      _
    $region23: #{tpu_custom_call.1} parent=1 // pred_check_branch
      %69 = sbr.rel (0) target = $region25
    $region24: #{tpu_custom_call.1} parent=1 // pred_region
      _
    $region25: #{tpu_custom_call.1} parent=1 // pred_fallthru
      _
    // Predicated region
    $region26: #{tpu_custom_call.1} parent=1 // pred_check
      _
    $region27: #{tpu_custom_call.1} parent=1 // pred_check_branch
      %71 = sbr.rel (0) target = $region29
    $region28: #{tpu_custom_call.1} parent=1 // pred_region
      _
    $region29: #{tpu_custom_call.1} parent=1 // pred_fallthru
      _
    // Predicated region
    $region30: #{tpu_custom_call.1} parent=1 // pred_check
      _
    $region31: #{tpu_custom_call.1} parent=1 // pred_check_branch
      %73 = sbr.rel (0) target = $region33
    $region32: #{tpu_custom_call.1} parent=1 // pred_region
      %s75 = ssub.s32 1024, 1024
      %76 = vsyncadd [#allocation9], %s75
      %s77 = sshll.u32 [#allocation8], 4
      %s78 = int_to_ptr.vmem [resolvable:$true] %s77
      %83 = dma.hbm_to_vmem [thread:$0]  %s7, 1024, %s78, [#allocation9], 64, 64, 4
    $region33: #{tpu_custom_call.1} parent=1 // pred_fallthru
      _
    // Predicated region
    $region34: #{tpu_custom_call.1} parent=1 // pred_check
      _
    $region35: #{tpu_custom_call.1} parent=1 // pred_check_branch
      %85 = sbr.rel (0) target = $region37
    $region36: #{tpu_custom_call.1} parent=1 // pred_region
      _
    $region37: #{tpu_custom_call.1} parent=1 // pred_fallthru
      _
    // Predicated region
    $region38: #{tpu_custom_call.1} parent=1 // pred_check
      _
    $region39: #{tpu_custom_call.1} parent=1 // pred_check_branch
      %87 = sbr.rel (0) target = $region41
    $region40: #{tpu_custom_call.1} parent=1 // pred_region
      %s89 = ssub.s32 512, 512
      %90 = vsyncadd [#allocation9], %s89
      %s91 = sshll.u32 [#allocation10], 4
      %s92 = int_to_ptr.vmem [resolvable:$true] %s91
      %97 = dma.hbm_to_vmem [thread:$0]  %s9, 512, %s92, [#allocation9], 64, 64, 4
    $region41: #{tpu_custom_call.1} parent=1 // pred_fallthru
      _
    // Predicated region
    $region42: #{tpu_custom_call.1} parent=1 // pred_check
      _
    $region43: #{tpu_custom_call.1} parent=1 // pred_check_branch
      %99 = sbr.rel (0) target = $region45
    $region44: #{tpu_custom_call.1} parent=1 // pred_region
      _
    $region45: #{tpu_custom_call.1} parent=1 // pred_fallthru
      _
    // Predicated region
    $region46: #{tpu_custom_call.1} parent=1 // pred_check
      _
    $region47: #{tpu_custom_call.1} parent=1 // pred_check_branch
      %101 = sbr.rel (0) target = $region49
    $region48: #{tpu_custom_call.1} parent=1 // pred_region
      _
    $region49: #{tpu_custom_call.1} parent=1 // pred_fallthru
      _
    // Predicated region
    $region50: #{tpu_custom_call.1} parent=1 // pred_check
      _
    $region51: #{tpu_custom_call.1} parent=1 // pred_check_branch
      %103 = sbr.rel (0) target = $region53
    $region52: #{tpu_custom_call.1} parent=1 // pred_region
      %s105 = ssub.s32 1024, 1024
      %106 = vsyncadd [#allocation12], %s105
      %s107 = sshll.u32 [#allocation11], 4
      %s108 = int_to_ptr.vmem [resolvable:$true] %s107
      %113 = dma.hbm_to_vmem [thread:$0]  %s12, 1024, %s108, [#allocation12], 64, 64, 4
    $region53: #{tpu_custom_call.1} parent=1 // pred_fallthru
      _
    // Predicated region
    $region54: #{tpu_custom_call.1} parent=1 // pred_check
      _
    $region55: #{tpu_custom_call.1} parent=1 // pred_check_branch
      %115 = sbr.rel (0) target = $region57
    $region56: #{tpu_custom_call.1} parent=1 // pred_region
      _
    $region57: #{tpu_custom_call.1} parent=1 // pred_fallthru
      _
    // Predicated region
    $region58: #{tpu_custom_call.1} parent=1 // pred_check
      _
    $region59: #{tpu_custom_call.1} parent=1 // pred_check_branch
      %117 = sbr.rel (0) target = $region61
    $region60: #{tpu_custom_call.1} parent=1 // pred_region
      _
    $region61: #{tpu_custom_call.1} parent=1 // pred_fallthru
      _
    // Predicated region
    $region62: #{tpu_custom_call.1} parent=1 // pred_check
      _
    $region63: #{tpu_custom_call.1} parent=1 // pred_check_branch
      %119 = sbr.rel (0) target = $region65
    $region64: #{tpu_custom_call.1} parent=1 // pred_region
      %s121 = ssub.s32 1024, 1024
      %122 = vsyncadd [#allocation12], %s121
      %s123 = sshll.u32 [#allocation13], 4
      %s124 = int_to_ptr.vmem [resolvable:$true] %s123
      %129 = dma.hbm_to_vmem [thread:$0]  %s15, 1024, %s124, [#allocation12], 64, 64, 4
    $region65: #{tpu_custom_call.1} parent=1 // pred_fallthru
      _
    // Predicated region
    $region66: #{tpu_custom_call.1} parent=1 // pred_check
      _
    $region67: #{tpu_custom_call.1} parent=1 // pred_check_branch
      %131 = sbr.rel (0) target = $region69
    $region68: #{tpu_custom_call.1} parent=1 // pred_region
      _
    $region69: #{tpu_custom_call.1} parent=1 // pred_fallthru
      _
    // Predicated region
    $region70: #{tpu_custom_call.1} parent=1 // pred_check
      _
    $region71: #{tpu_custom_call.1} parent=1 // pred_check_branch
      %133 = sbr.rel (0) target = $region73
    $region72: #{tpu_custom_call.1} parent=1 // pred_region
      %134 = dma.done [#allocation3], 128
    $region73: #{tpu_custom_call.1} parent=1 // pred_fallthru
      _
    // Predicated region
    $region74: #{tpu_custom_call.1} parent=1 // pred_check
      _
    $region75: #{tpu_custom_call.1} parent=1 // pred_check_branch
      %136 = sbr.rel (0) target = $region77
    $region76: #{tpu_custom_call.1} parent=1 // pred_region
      %137 = dma.done [#allocation6], 512
    $region77: #{tpu_custom_call.1} parent=1 // pred_fallthru
      _
    // Predicated region
    $region78: #{tpu_custom_call.1} parent=1 // pred_check
      _
    $region79: #{tpu_custom_call.1} parent=1 // pred_check_branch
      %139 = sbr.rel (0) target = $region81
    $region80: #{tpu_custom_call.1} parent=1 // pred_region
      %140 = dma.done [#allocation6], 1024
    $region81: #{tpu_custom_call.1} parent=1 // pred_fallthru
      _
    // Predicated region
    $region82: #{tpu_custom_call.1} parent=1 // pred_check
      _
    $region83: #{tpu_custom_call.1} parent=1 // pred_check_branch
      %142 = sbr.rel (0) target = $region85
    $region84: #{tpu_custom_call.1} parent=1 // pred_region
      %143 = dma.done [#allocation9], 1024
    $region85: #{tpu_custom_call.1} parent=1 // pred_fallthru
      _
    // Predicated region
    $region86: #{tpu_custom_call.1} parent=1 // pred_check
      _
    $region87: #{tpu_custom_call.1} parent=1 // pred_check_branch
      %145 = sbr.rel (0) target = $region89
    $region88: #{tpu_custom_call.1} parent=1 // pred_region
      %146 = dma.done [#allocation9], 512
    $region89: #{tpu_custom_call.1} parent=1 // pred_fallthru
      _
    // Predicated region
    $region90: #{tpu_custom_call.1} parent=1 // pred_check
      _
    $region91: #{tpu_custom_call.1} parent=1 // pred_check_branch
      %148 = sbr.rel (0) target = $region93
    $region92: #{tpu_custom_call.1} parent=1 // pred_region
      %149 = dma.done [#allocation12], 1024
    $region93: #{tpu_custom_call.1} parent=1 // pred_fallthru
      _
    // Predicated region
    $region94: #{tpu_custom_call.1} parent=1 // pred_check
      _
    $region95: #{tpu_custom_call.1} parent=1 // pred_check_branch
      %151 = sbr.rel (0) target = $region97
    $region96: #{tpu_custom_call.1} parent=1 // pred_region
      %152 = dma.done [#allocation12], 1024
    $region97: #{tpu_custom_call.1} parent=1 // pred_fallthru
      _
    %v154 = vld [vmem:[#allocation2] sm:$0xff]
    %v155 = vpack.c.bf16 %v154, %v154
    %v156 = vld [vmem:[#allocation5] sm:$0xf]
    %v157 = vld [vmem:[#allocation5 + $0x4] sm:$0xf]
    %v158 = vld [vmem:[#allocation5 + $0x8] sm:$0xf]
    %v159 = vld [vmem:[#allocation5 + $0xc] sm:$0xf]
    %v160 = vld [vmem:[#allocation5 + $0x10] sm:$0xf]
    %v161 = vld [vmem:[#allocation5 + $0x14] sm:$0xf]
    %v162 = vld [vmem:[#allocation5 + $0x18] sm:$0xf]
    %v163 = vld [vmem:[#allocation5 + $0x1c] sm:$0xf]
    %v172 = vunpack.c.l.b16 %v156
    %v173 = vunpack.c.l.b16 %v157
    %v174 = vunpack.c.l.b16 %v158
    %v175 = vunpack.c.l.b16 %v159
    %v176 = vunpack.c.l.b16 %v160
    %v177 = vunpack.c.l.b16 %v161
    %v178 = vunpack.c.l.b16 %v162
    %v179 = vunpack.c.l.b16 %v163
    %v180 = vpack.c.b16 %v173, %v172
    %v181 = vpack.c.b16 %v175, %v174
    %v182 = vpack.c.b16 %v177, %v176
    %v183 = vpack.c.b16 %v179, %v178
    %vm188 = vcmask 523264
    %v190 = vsel %vm188, %v155, 0
    %192 = vmatprep.subr.bf16.mxu0 0
    %193 = vmatpush1.bf16.msra.mxu0 0
    %194 = vmatprep.subr.bf16.mxu0 0
    %195 = vmatpush1.bf16.msra.mxu0 0
    %196 = vmatprep.subr.bf16.mxu0 0
    %197 = vmatpush1.bf16.msra.mxu0 0
    %198 = vmatprep.subr.bf16.mxu0 0
    %199 = vmatpush1.bf16.msra.mxu0 0
    %200 = vmatprep.subr.bf16.mxu0 0
    %201 = vmatpush1.bf16.msra.mxu0 %v183
    %202 = vmatprep.subr.bf16.mxu0 0
    %203 = vmatpush1.bf16.msra.mxu0 %v182
    %204 = vmatprep.subr.bf16.mxu0 0
    %205 = vmatpush1.bf16.msra.mxu0 %v181
    %206 = vmatprep.subr.bf16.mxu0 0
    %207 = vmatpush1.bf16.msra.mxu0 %v180
    %208 = vmatprep.subr.bf16.mxu0 0
    %209 = vmatpush2.bf16.msra.mxu0 0
    %210 = vmatprep.subr.bf16.mxu0 0
    %211 = vmatpush2.bf16.msra.mxu0 0
    %212 = vmatprep.subr.bf16.mxu0 0
    %213 = vmatpush2.bf16.msra.mxu0 0
    %214 = vmatprep.subr.bf16.mxu0 0
    %215 = vmatpush2.bf16.msra.mxu0 0
    %216 = vmatprep.subr.bf16.mxu0 0
    %217 = vmatpush2.bf16.msra.mxu0 0
    %218 = vmatprep.subr.bf16.mxu0 0
    %219 = vmatpush2.bf16.msra.mxu0 0
    %220 = vmatprep.subr.bf16.mxu0 0
    %221 = vmatpush2.bf16.msra.mxu0 0
    %222 = vmatprep.subr.bf16.mxu0 0
    %223 = vmatpush2.bf16.msra.mxu0 0
    %224 = vmatprep.mubr.bf16.mxu0 0
    %225 = vmatmul.mubr.bf16.gmra.mxu0 %v190
    %v226 = vpop.f32.mrf.mxu0
    %v227 = vadd.f32 0.0, %v226
    %v228 = vpop.f32.mrf.mxu0
    %v229 = vpop.f32.mrf.mxu0
    %v230 = vpop.f32.mrf.mxu0
    %231 = vdwg.mxu0
    %v232 = vrot.slane %v227, 4
    %v233 = vadd.f32 %v227, %v232
    %v234 = vrot.slane %v233, 2
    %v235 = vadd.f32 %v233, %v234
    %v236 = vrot.slane %v235, 1
    %v237 = vadd.f32 %v235, %v236
    %v238 = vmul.f32 %v227, %v227
    %v239 = vrot.slane %v238, 4
    %v240 = vadd.f32 %v238, %v239
    %v241 = vrot.slane %v240, 2
    %v242 = vadd.f32 %v240, %v241
    %v243 = vrot.slane %v242, 1
    %v244 = vadd.f32 %v242, %v243
    %v245 = vmul.f32 %v237, 0.125
    %v246 = vmul.f32 %v244, 0.125
    %v247 = vmul.f32 %v245, %v245
    %v248 = vsub.f32 %v246, %v247
    %v249 = vmax.f32 %v248, 0.0
    %v250 = vld [vmem:[%s2] sm:$0x1]
    %v251 = vadd.f32 %v249, 1e-05
    %v252 = vrsqrt.pop %v251
    %v253 = vmul.f32 %v250, %v252
    %v254 = vld [vmem:[%s3] sm:$0x1]
    %v255 = vmul.f32 %v245, %v253
    %v256 = vsub.f32 %v254, %v255
    %v258 = vlaneseq
    %v259 = vshrl.u32 %v258, 7
    %v260 = vsub.s32 0, %v259
    %v261 = vrot.slane %v253, %v260
    %v263 = vmul.f32 %v227, %v261
    %v265 = vlaneseq
    %v266 = vshrl.u32 %v265, 7
    %v267 = vsub.s32 0, %v266
    %v268 = vrot.slane %v256, %v267
    %v270 = vadd.f32 %v263, %v268
    %v271 = vmax.f32 %v270, 0.0
    %v272 = vpack.c.bf16 %v271, %v271
    %v273 = vld [vmem:[#allocation7] sm:$0xf]
    %v274 = vld [vmem:[#allocation7 + $0x4] sm:$0xf]
    %v275 = vld [vmem:[#allocation7 + $0x8] sm:$0xf]
    %v276 = vld [vmem:[#allocation7 + $0xc] sm:$0xf]
    %v277 = vld [vmem:[#allocation7 + $0x10] sm:$0xf]
    %v278 = vld [vmem:[#allocation7 + $0x14] sm:$0xf]
    %v279 = vld [vmem:[#allocation7 + $0x18] sm:$0xf]
    %v280 = vld [vmem:[#allocation7 + $0x1c] sm:$0xf]
    %v281 = vld [vmem:[#allocation7 + $0x20] sm:$0xf]
    %v282 = vld [vmem:[#allocation7 + $0x24] sm:$0xf]
    %v283 = vld [vmem:[#allocation7 + $0x28] sm:$0xf]
    %v284 = vld [vmem:[#allocation7 + $0x2c] sm:$0xf]
    %v285 = vld [vmem:[#allocation7 + $0x30] sm:$0xf]
    %v286 = vld [vmem:[#allocation7 + $0x34] sm:$0xf]
    %v287 = vld [vmem:[#allocation7 + $0x38] sm:$0xf]
    %v288 = vld [vmem:[#allocation7 + $0x3c] sm:$0xf]
    %v305 = vunpack.c.l.b16 %v273
    %v306 = vunpack.c.l.b16 %v274
    %v307 = vunpack.c.l.b16 %v275
    %v308 = vunpack.c.l.b16 %v276
    %v309 = vunpack.c.l.b16 %v277
    %v310 = vunpack.c.l.b16 %v278
    %v311 = vunpack.c.l.b16 %v279
    %v312 = vunpack.c.l.b16 %v280
    %v313 = vunpack.c.l.b16 %v281
    %v314 = vunpack.c.l.b16 %v282
    %v315 = vunpack.c.l.b16 %v283
    %v316 = vunpack.c.l.b16 %v284
    %v317 = vunpack.c.l.b16 %v285
    %v318 = vunpack.c.l.b16 %v286
    %v319 = vunpack.c.l.b16 %v287
    %v320 = vunpack.c.l.b16 %v288
    %v321 = vpack.c.b16 %v306, %v305
    %v322 = vpack.c.b16 %v308, %v307
    %v323 = vpack.c.b16 %v310, %v309
    %v324 = vpack.c.b16 %v312, %v311
    %v325 = vpack.c.b16 %v314, %v313
    %v326 = vpack.c.b16 %v316, %v315
    %v327 = vpack.c.b16 %v318, %v317
    %v328 = vpack.c.b16 %v320, %v319
    %337 = vmatprep.subr.bf16.mxu0 0
    %338 = vmatpush1.bf16.msra.mxu0 %v328
    %339 = vmatprep.subr.bf16.mxu0 0
    %340 = vmatpush1.bf16.msra.mxu0 %v327
    %341 = vmatprep.subr.bf16.mxu0 0
    %342 = vmatpush1.bf16.msra.mxu0 %v326
    %343 = vmatprep.subr.bf16.mxu0 0
    %344 = vmatpush1.bf16.msra.mxu0 %v325
    %345 = vmatprep.subr.bf16.mxu0 0
    %346 = vmatpush1.bf16.msra.mxu0 %v324
    %347 = vmatprep.subr.bf16.mxu0 0
    %348 = vmatpush1.bf16.msra.mxu0 %v323
    %349 = vmatprep.subr.bf16.mxu0 0
    %350 = vmatpush1.bf16.msra.mxu0 %v322
    %351 = vmatprep.subr.bf16.mxu0 0
    %352 = vmatpush1.bf16.msra.mxu0 %v321
    %353 = vmatprep.subr.bf16.mxu0 0
    %354 = vmatpush2.bf16.msra.mxu0 0
    %355 = vmatprep.subr.bf16.mxu0 0
    %356 = vmatpush2.bf16.msra.mxu0 0
    %357 = vmatprep.subr.bf16.mxu0 0
    %358 = vmatpush2.bf16.msra.mxu0 0
    %359 = vmatprep.subr.bf16.mxu0 0
    %360 = vmatpush2.bf16.msra.mxu0 0
    %361 = vmatprep.subr.bf16.mxu0 0
    %362 = vmatpush2.bf16.msra.mxu0 0
    %363 = vmatprep.subr.bf16.mxu0 0
    %364 = vmatpush2.bf16.msra.mxu0 0
    %365 = vmatprep.subr.bf16.mxu0 0
    %366 = vmatpush2.bf16.msra.mxu0 0
    %367 = vmatprep.subr.bf16.mxu0 0
    %368 = vmatpush2.bf16.msra.mxu0 0
    %369 = vmatprep.mubr.bf16.mxu0 0
    %370 = vmatmul.mubr.bf16.gmra.mxu0 %v272
    %v371 = vpop.f32.mrf.mxu0
    %v372 = vadd.f32 0.0, %v371
    %v373 = vpop.f32.mrf.mxu0
    %v374 = vpop.f32.mrf.mxu0
    %v375 = vpop.f32.mrf.mxu0
    %376 = vdwg.mxu0
    %v377 = vrot.slane %v372, 4
    %v378 = vadd.f32 %v372, %v377
    %v379 = vrot.slane %v378, 2
    %v380 = vadd.f32 %v378, %v379
    %v381 = vrot.slane %v380, 1
    %v382 = vadd.f32 %v380, %v381
    %v383 = vmul.f32 %v372, %v372
    %v384 = vrot.slane %v383, 4
    %v385 = vadd.f32 %v383, %v384
    %v386 = vrot.slane %v385, 2
    %v387 = vadd.f32 %v385, %v386
    %v388 = vrot.slane %v387, 1
    %v389 = vadd.f32 %v387, %v388
    %v390 = vmul.f32 %v382, 0.125
    %v391 = vmul.f32 %v389, 0.125
    %v392 = vmul.f32 %v390, %v390
    %v393 = vsub.f32 %v391, %v392
    %v394 = vmax.f32 %v393, 0.0
    %v395 = vld [vmem:[%s5] sm:$0x1]
    %v396 = vadd.f32 %v394, 1e-05
    %v397 = vrsqrt.pop %v396
    %v398 = vmul.f32 %v395, %v397
    %v399 = vld [vmem:[%s6] sm:$0x1]
    %v400 = vmul.f32 %v390, %v398
    %v401 = vsub.f32 %v399, %v400
    %v403 = vlaneseq
    %v404 = vshrl.u32 %v403, 7
    %v405 = vsub.s32 0, %v404
    %v406 = vrot.slane %v398, %v405
    %v408 = vmul.f32 %v372, %v406
    %v410 = vlaneseq
    %v411 = vshrl.u32 %v410, 7
    %v412 = vsub.s32 0, %v411
    %v413 = vrot.slane %v401, %v412
    %v415 = vadd.f32 %v408, %v413
    %v416 = vmax.f32 %v415, 0.0
    %v417 = vpack.c.bf16 %v416, %v416
    %v418 = vld [vmem:[#allocation8] sm:$0xf]
    %v419 = vld [vmem:[#allocation8 + $0x4] sm:$0xf]
    %v420 = vld [vmem:[#allocation8 + $0x8] sm:$0xf]
    %v421 = vld [vmem:[#allocation8 + $0xc] sm:$0xf]
    %v422 = vld [vmem:[#allocation8 + $0x10] sm:$0xf]
    %v423 = vld [vmem:[#allocation8 + $0x14] sm:$0xf]
    %v424 = vld [vmem:[#allocation8 + $0x18] sm:$0xf]
    %v425 = vld [vmem:[#allocation8 + $0x1c] sm:$0xf]
    %v426 = vld [vmem:[#allocation8 + $0x20] sm:$0xf]
    %v427 = vld [vmem:[#allocation8 + $0x24] sm:$0xf]
    %v428 = vld [vmem:[#allocation8 + $0x28] sm:$0xf]
    %v429 = vld [vmem:[#allocation8 + $0x2c] sm:$0xf]
    %v430 = vld [vmem:[#allocation8 + $0x30] sm:$0xf]
    %v431 = vld [vmem:[#allocation8 + $0x34] sm:$0xf]
    %v432 = vld [vmem:[#allocation8 + $0x38] sm:$0xf]
    %v433 = vld [vmem:[#allocation8 + $0x3c] sm:$0xf]
    %v434 = vld [vmem:[%s8] sm:$0x1]
    %v436 = vlaneseq
    %v437 = vshrl.u32 %v436, 7
    %v438 = vsub.s32 0, %v437
    %v439 = vrot.slane %v434, %v438
    %v457 = vunpack.c.l.b16 %v418
    %v458 = vunpack.c.l.b16 %v419
    %v459 = vunpack.c.l.b16 %v420
    %v460 = vunpack.c.l.b16 %v421
    %v461 = vunpack.c.l.b16 %v422
    %v462 = vunpack.c.l.b16 %v423
    %v463 = vunpack.c.l.b16 %v424
    %v464 = vunpack.c.l.b16 %v425
    %v465 = vunpack.c.l.b16 %v426
    %v466 = vunpack.c.l.b16 %v427
    %v467 = vunpack.c.l.b16 %v428
    %v468 = vunpack.c.l.b16 %v429
    %v469 = vunpack.c.l.b16 %v430
    %v470 = vunpack.c.l.b16 %v431
    %v471 = vunpack.c.l.b16 %v432
    %v472 = vunpack.c.l.b16 %v433
    %v473 = vpack.c.b16 %v458, %v457
    %v474 = vpack.c.b16 %v460, %v459
    %v475 = vpack.c.b16 %v462, %v461
    %v476 = vpack.c.b16 %v464, %v463
    %v477 = vpack.c.b16 %v466, %v465
    %v478 = vpack.c.b16 %v468, %v467
    %v479 = vpack.c.b16 %v470, %v469
    %v480 = vpack.c.b16 %v472, %v471
    %489 = vmatprep.subr.bf16.mxu0 0
    %490 = vmatpush1.bf16.msra.mxu0 %v480
    %491 = vmatprep.subr.bf16.mxu0 0
    %492 = vmatpush1.bf16.msra.mxu0 %v479
    %493 = vmatprep.subr.bf16.mxu0 0
    %494 = vmatpush1.bf16.msra.mxu0 %v478
    %495 = vmatprep.subr.bf16.mxu0 0
    %496 = vmatpush1.bf16.msra.mxu0 %v477
    %497 = vmatprep.subr.bf16.mxu0 0
    %498 = vmatpush1.bf16.msra.mxu0 %v476
    %499 = vmatprep.subr.bf16.mxu0 0
    %500 = vmatpush1.bf16.msra.mxu0 %v475
    %501 = vmatprep.subr.bf16.mxu0 0
    %502 = vmatpush1.bf16.msra.mxu0 %v474
    %503 = vmatprep.subr.bf16.mxu0 0
    %504 = vmatpush1.bf16.msra.mxu0 %v473
    %505 = vmatprep.subr.bf16.mxu0 0
    %506 = vmatpush2.bf16.msra.mxu0 0
    %507 = vmatprep.subr.bf16.mxu0 0
    %508 = vmatpush2.bf16.msra.mxu0 0
    %509 = vmatprep.subr.bf16.mxu0 0
    %510 = vmatpush2.bf16.msra.mxu0 0
    %511 = vmatprep.subr.bf16.mxu0 0
    %512 = vmatpush2.bf16.msra.mxu0 0
    %513 = vmatprep.subr.bf16.mxu0 0
    %514 = vmatpush2.bf16.msra.mxu0 0
    %515 = vmatprep.subr.bf16.mxu0 0
    %516 = vmatpush2.bf16.msra.mxu0 0
    %517 = vmatprep.subr.bf16.mxu0 0
    %518 = vmatpush2.bf16.msra.mxu0 0
    %519 = vmatprep.subr.bf16.mxu0 0
    %520 = vmatpush2.bf16.msra.mxu0 0
    %521 = vmatprep.mubr.bf16.mxu0 0
    %522 = vmatmul.mubr.bf16.gmra.mxu0 %v417
    %v523 = vpop.f32.mrf.mxu0
    %v524 = vadd.f32 %v439, %v523
    %v525 = vpop.f32.mrf.mxu0
    %v526 = vpop.f32.mrf.mxu0
    %v527 = vpop.f32.mrf.mxu0
    %528 = vdwg.mxu0
    %529 = vst [vmem:[#allocation14] sm:$0xff] %v524
    %v530 = vld [vmem:[#allocation10] sm:$0xf]
    %v531 = vld [vmem:[#allocation10 + $0x4] sm:$0xf]
    %v532 = vld [vmem:[#allocation10 + $0x8] sm:$0xf]
    %v533 = vld [vmem:[#allocation10 + $0xc] sm:$0xf]
    %v534 = vld [vmem:[#allocation10 + $0x10] sm:$0xf]
    %v535 = vld [vmem:[#allocation10 + $0x14] sm:$0xf]
    %v536 = vld [vmem:[#allocation10 + $0x18] sm:$0xf]
    %v537 = vld [vmem:[#allocation10 + $0x1c] sm:$0xf]
    %v546 = vunpack.c.l.b16 %v530
    %v547 = vunpack.c.l.b16 %v531
    %v548 = vunpack.c.l.b16 %v532
    %v549 = vunpack.c.l.b16 %v533
    %v550 = vunpack.c.l.b16 %v534
    %v551 = vunpack.c.l.b16 %v535
    %v552 = vunpack.c.l.b16 %v536
    %v553 = vunpack.c.l.b16 %v537
    %v554 = vpack.c.b16 %v547, %v546
    %v555 = vpack.c.b16 %v549, %v548
    %v556 = vpack.c.b16 %v551, %v550
    %v557 = vpack.c.b16 %v553, %v552
    %562 = vmatprep.subr.bf16.mxu0 0
    %563 = vmatpush1.bf16.msra.mxu0 0
    %564 = vmatprep.subr.bf16.mxu0 0
    %565 = vmatpush1.bf16.msra.mxu0 0
    %566 = vmatprep.subr.bf16.mxu0 0
    %567 = vmatpush1.bf16.msra.mxu0 0
    %568 = vmatprep.subr.bf16.mxu0 0
    %569 = vmatpush1.bf16.msra.mxu0 0
    %570 = vmatprep.subr.bf16.mxu0 0
    %571 = vmatpush1.bf16.msra.mxu0 %v557
    %572 = vmatprep.subr.bf16.mxu0 0
    %573 = vmatpush1.bf16.msra.mxu0 %v556
    %574 = vmatprep.subr.bf16.mxu0 0
    %575 = vmatpush1.bf16.msra.mxu0 %v555
    %576 = vmatprep.subr.bf16.mxu0 0
    %577 = vmatpush1.bf16.msra.mxu0 %v554
    %578 = vmatprep.subr.bf16.mxu0 0
    %579 = vmatpush2.bf16.msra.mxu0 0
    %580 = vmatprep.subr.bf16.mxu0 0
    %581 = vmatpush2.bf16.msra.mxu0 0
    %582 = vmatprep.subr.bf16.mxu0 0
    %583 = vmatpush2.bf16.msra.mxu0 0
    %584 = vmatprep.subr.bf16.mxu0 0
    %585 = vmatpush2.bf16.msra.mxu0 0
    %586 = vmatprep.subr.bf16.mxu0 0
    %587 = vmatpush2.bf16.msra.mxu0 0
    %588 = vmatprep.subr.bf16.mxu0 0
    %589 = vmatpush2.bf16.msra.mxu0 0
    %590 = vmatprep.subr.bf16.mxu0 0
    %591 = vmatpush2.bf16.msra.mxu0 0
    %592 = vmatprep.subr.bf16.mxu0 0
    %593 = vmatpush2.bf16.msra.mxu0 0
    %594 = vmatprep.mubr.bf16.mxu0 0
    %595 = vmatmul.mubr.bf16.gmra.mxu0 %v190
    %v596 = vpop.f32.mrf.mxu0
    %v597 = vadd.f32 0.0, %v596
    %v598 = vpop.f32.mrf.mxu0
    %v599 = vpop.f32.mrf.mxu0
    %v600 = vpop.f32.mrf.mxu0
    %601 = vdwg.mxu0
    %v602 = vrot.slane %v597, 4
    %v603 = vadd.f32 %v597, %v602
    %v604 = vrot.slane %v603, 2
    %v605 = vadd.f32 %v603, %v604
    %v606 = vrot.slane %v605, 1
    %v607 = vadd.f32 %v605, %v606
    %v608 = vmul.f32 %v597, %v597
    %v609 = vrot.slane %v608, 4
    %v610 = vadd.f32 %v608, %v609
    %v611 = vrot.slane %v610, 2
    %v612 = vadd.f32 %v610, %v611
    %v613 = vrot.slane %v612, 1
    %v614 = vadd.f32 %v612, %v613
    %v615 = vmul.f32 %v607, 0.125
    %v616 = vmul.f32 %v614, 0.125
    %v617 = vmul.f32 %v615, %v615
    %v618 = vsub.f32 %v616, %v617
    %v619 = vmax.f32 %v618, 0.0
    %v620 = vld [vmem:[%s10] sm:$0x1]
    %v621 = vadd.f32 %v619, 1e-05
    %v622 = vrsqrt.pop %v621
    %v623 = vmul.f32 %v620, %v622
    %v624 = vld [vmem:[%s11] sm:$0x1]
    %v625 = vmul.f32 %v615, %v623
    %v626 = vsub.f32 %v624, %v625
    %v628 = vlaneseq
    %v629 = vshrl.u32 %v628, 7
    %v630 = vsub.s32 0, %v629
    %v631 = vrot.slane %v623, %v630
    %v633 = vmul.f32 %v597, %v631
    %v635 = vlaneseq
    %v636 = vshrl.u32 %v635, 7
    %v637 = vsub.s32 0, %v636
    %v638 = vrot.slane %v626, %v637
    %v640 = vadd.f32 %v633, %v638
    %v641 = vmax.f32 %v640, 0.0
    %v642 = vpack.c.bf16 %v641, %v641
    %v643 = vld [vmem:[#allocation11] sm:$0xf]
    %v644 = vld [vmem:[#allocation11 + $0x4] sm:$0xf]
    %v645 = vld [vmem:[#allocation11 + $0x8] sm:$0xf]
    %v646 = vld [vmem:[#allocation11 + $0xc] sm:$0xf]
    %v647 = vld [vmem:[#allocation11 + $0x10] sm:$0xf]
    %v648 = vld [vmem:[#allocation11 + $0x14] sm:$0xf]
    %v649 = vld [vmem:[#allocation11 + $0x18] sm:$0xf]
    %v650 = vld [vmem:[#allocation11 + $0x1c] sm:$0xf]
    %v651 = vld [vmem:[#allocation11 + $0x20] sm:$0xf]
    %v652 = vld [vmem:[#allocation11 + $0x24] sm:$0xf]
    %v653 = vld [vmem:[#allocation11 + $0x28] sm:$0xf]
    %v654 = vld [vmem:[#allocation11 + $0x2c] sm:$0xf]
    %v655 = vld [vmem:[#allocation11 + $0x30] sm:$0xf]
    %v656 = vld [vmem:[#allocation11 + $0x34] sm:$0xf]
    %v657 = vld [vmem:[#allocation11 + $0x38] sm:$0xf]
    %v658 = vld [vmem:[#allocation11 + $0x3c] sm:$0xf]
    %v675 = vunpack.c.l.b16 %v643
    %v676 = vunpack.c.l.b16 %v644
    %v677 = vunpack.c.l.b16 %v645
    %v678 = vunpack.c.l.b16 %v646
    %v679 = vunpack.c.l.b16 %v647
    %v680 = vunpack.c.l.b16 %v648
    %v681 = vunpack.c.l.b16 %v649
    %v682 = vunpack.c.l.b16 %v650
    %v683 = vunpack.c.l.b16 %v651
    %v684 = vunpack.c.l.b16 %v652
    %v685 = vunpack.c.l.b16 %v653
    %v686 = vunpack.c.l.b16 %v654
    %v687 = vunpack.c.l.b16 %v655
    %v688 = vunpack.c.l.b16 %v656
    %v689 = vunpack.c.l.b16 %v657
    %v690 = vunpack.c.l.b16 %v658
    %v691 = vpack.c.b16 %v676, %v675
    %v692 = vpack.c.b16 %v678, %v677
    %v693 = vpack.c.b16 %v680, %v679
    %v694 = vpack.c.b16 %v682, %v681
    %v695 = vpack.c.b16 %v684, %v683
    %v696 = vpack.c.b16 %v686, %v685
    %v697 = vpack.c.b16 %v688, %v687
    %v698 = vpack.c.b16 %v690, %v689
    %707 = vmatprep.subr.bf16.mxu0 0
    %708 = vmatpush1.bf16.msra.mxu0 %v698
    %709 = vmatprep.subr.bf16.mxu0 0
    %710 = vmatpush1.bf16.msra.mxu0 %v697
    %711 = vmatprep.subr.bf16.mxu0 0
    %712 = vmatpush1.bf16.msra.mxu0 %v696
    %713 = vmatprep.subr.bf16.mxu0 0
    %714 = vmatpush1.bf16.msra.mxu0 %v695
    %715 = vmatprep.subr.bf16.mxu0 0
    %716 = vmatpush1.bf16.msra.mxu0 %v694
    %717 = vmatprep.subr.bf16.mxu0 0
    %718 = vmatpush1.bf16.msra.mxu0 %v693
    %719 = vmatprep.subr.bf16.mxu0 0
    %720 = vmatpush1.bf16.msra.mxu0 %v692
    %721 = vmatprep.subr.bf16.mxu0 0
    %722 = vmatpush1.bf16.msra.mxu0 %v691
    %723 = vmatprep.subr.bf16.mxu0 0
    %724 = vmatpush2.bf16.msra.mxu0 0
    %725 = vmatprep.subr.bf16.mxu0 0
    %726 = vmatpush2.bf16.msra.mxu0 0
    %727 = vmatprep.subr.bf16.mxu0 0
    %728 = vmatpush2.bf16.msra.mxu0 0
    %729 = vmatprep.subr.bf16.mxu0 0
    %730 = vmatpush2.bf16.msra.mxu0 0
    %731 = vmatprep.subr.bf16.mxu0 0
    %732 = vmatpush2.bf16.msra.mxu0 0
    %733 = vmatprep.subr.bf16.mxu0 0
    %734 = vmatpush2.bf16.msra.mxu0 0
    %735 = vmatprep.subr.bf16.mxu0 0
    %736 = vmatpush2.bf16.msra.mxu0 0
    %737 = vmatprep.subr.bf16.mxu0 0
    %738 = vmatpush2.bf16.msra.mxu0 0
    %739 = vmatprep.mubr.bf16.mxu0 0
    %740 = vmatmul.mubr.bf16.gmra.mxu0 %v642
    %v741 = vpop.f32.mrf.mxu0
    %v742 = vadd.f32 0.0, %v741
    %v743 = vpop.f32.mrf.mxu0
    %v744 = vpop.f32.mrf.mxu0
    %v745 = vpop.f32.mrf.mxu0
    %746 = vdwg.mxu0
    %v747 = vrot.slane %v742, 4
    %v748 = vadd.f32 %v742, %v747
    %v749 = vrot.slane %v748, 2
    %v750 = vadd.f32 %v748, %v749
    %v751 = vrot.slane %v750, 1
    %v752 = vadd.f32 %v750, %v751
    %v753 = vmul.f32 %v742, %v742
    %v754 = vrot.slane %v753, 4
    %v755 = vadd.f32 %v753, %v754
    %v756 = vrot.slane %v755, 2
    %v757 = vadd.f32 %v755, %v756
    %v758 = vrot.slane %v757, 1
    %v759 = vadd.f32 %v757, %v758
    %v760 = vmul.f32 %v752, 0.125
    %v761 = vmul.f32 %v759, 0.125
    %v762 = vmul.f32 %v760, %v760
    %v763 = vsub.f32 %v761, %v762
    %v764 = vmax.f32 %v763, 0.0
    %v765 = vld [vmem:[%s13] sm:$0x1]
    %v766 = vadd.f32 %v764, 1e-05
    %v767 = vrsqrt.pop %v766
    %v768 = vmul.f32 %v765, %v767
    %v769 = vld [vmem:[%s14] sm:$0x1]
    %v770 = vmul.f32 %v760, %v768
    %v771 = vsub.f32 %v769, %v770
    %v773 = vlaneseq
    %v774 = vshrl.u32 %v773, 7
    %v775 = vsub.s32 0, %v774
    %v776 = vrot.slane %v768, %v775
    %v778 = vmul.f32 %v742, %v776
    %v780 = vlaneseq
    %v781 = vshrl.u32 %v780, 7
    %v782 = vsub.s32 0, %v781
    %v783 = vrot.slane %v771, %v782
    %v785 = vadd.f32 %v778, %v783
    %v786 = vmax.f32 %v785, 0.0
    %v787 = vpack.c.bf16 %v786, %v786
    %v788 = vld [vmem:[#allocation13] sm:$0xf]
    %v789 = vld [vmem:[#allocation13 + $0x4] sm:$0xf]
    %v790 = vld [vmem:[#allocation13 + $0x8] sm:$0xf]
    %v791 = vld [vmem:[#allocation13 + $0xc] sm:$0xf]
    %v792 = vld [vmem:[#allocation13 + $0x10] sm:$0xf]
    %v793 = vld [vmem:[#allocation13 + $0x14] sm:$0xf]
    %v794 = vld [vmem:[#allocation13 + $0x18] sm:$0xf]
    %v795 = vld [vmem:[#allocation13 + $0x1c] sm:$0xf]
    %v796 = vld [vmem:[#allocation13 + $0x20] sm:$0xf]
    %v797 = vld [vmem:[#allocation13 + $0x24] sm:$0xf]
    %v798 = vld [vmem:[#allocation13 + $0x28] sm:$0xf]
    %v799 = vld [vmem:[#allocation13 + $0x2c] sm:$0xf]
    %v800 = vld [vmem:[#allocation13 + $0x30] sm:$0xf]
    %v801 = vld [vmem:[#allocation13 + $0x34] sm:$0xf]
    %v802 = vld [vmem:[#allocation13 + $0x38] sm:$0xf]
    %v803 = vld [vmem:[#allocation13 + $0x3c] sm:$0xf]
    %v804 = vld [vmem:[%s16] sm:$0x1]
    %v806 = vlaneseq
    %v807 = vshrl.u32 %v806, 7
    %v808 = vsub.s32 0, %v807
    %v809 = vrot.slane %v804, %v808
    %v827 = vunpack.c.l.b16 %v788
    %v828 = vunpack.c.l.b16 %v789
    %v829 = vunpack.c.l.b16 %v790
    %v830 = vunpack.c.l.b16 %v791
    %v831 = vunpack.c.l.b16 %v792
    %v832 = vunpack.c.l.b16 %v793
    %v833 = vunpack.c.l.b16 %v794
    %v834 = vunpack.c.l.b16 %v795
    %v835 = vunpack.c.l.b16 %v796
    %v836 = vunpack.c.l.b16 %v797
    %v837 = vunpack.c.l.b16 %v798
    %v838 = vunpack.c.l.b16 %v799
    %v839 = vunpack.c.l.b16 %v800
    %v840 = vunpack.c.l.b16 %v801
    %v841 = vunpack.c.l.b16 %v802
    %v842 = vunpack.c.l.b16 %v803
    %v843 = vpack.c.b16 %v828, %v827
    %v844 = vpack.c.b16 %v830, %v829
    %v845 = vpack.c.b16 %v832, %v831
    %v846 = vpack.c.b16 %v834, %v833
    %v847 = vpack.c.b16 %v836, %v835
    %v848 = vpack.c.b16 %v838, %v837
    %v849 = vpack.c.b16 %v840, %v839
    %v850 = vpack.c.b16 %v842, %v841
    %859 = vmatprep.subr.bf16.mxu0 0
    %860 = vmatpush1.bf16.msra.mxu0 %v850
    %861 = vmatprep.subr.bf16.mxu0 0
    %862 = vmatpush1.bf16.msra.mxu0 %v849
    %863 = vmatprep.subr.bf16.mxu0 0
    %864 = vmatpush1.bf16.msra.mxu0 %v848
    %865 = vmatprep.subr.bf16.mxu0 0
    %866 = vmatpush1.bf16.msra.mxu0 %v847
    %867 = vmatprep.subr.bf16.mxu0 0
    %868 = vmatpush1.bf16.msra.mxu0 %v846
    %869 = vmatprep.subr.bf16.mxu0 0
    %870 = vmatpush1.bf16.msra.mxu0 %v845
    %871 = vmatprep.subr.bf16.mxu0 0
    %872 = vmatpush1.bf16.msra.mxu0 %v844
    %873 = vmatprep.subr.bf16.mxu0 0
    %874 = vmatpush1.bf16.msra.mxu0 %v843
    %875 = vmatprep.subr.bf16.mxu0 0
    %876 = vmatpush2.bf16.msra.mxu0 0
    %877 = vmatprep.subr.bf16.mxu0 0
    %878 = vmatpush2.bf16.msra.mxu0 0
    %879 = vmatprep.subr.bf16.mxu0 0
    %880 = vmatpush2.bf16.msra.mxu0 0
    %881 = vmatprep.subr.bf16.mxu0 0
    %882 = vmatpush2.bf16.msra.mxu0 0
    %883 = vmatprep.subr.bf16.mxu0 0
    %884 = vmatpush2.bf16.msra.mxu0 0
    %885 = vmatprep.subr.bf16.mxu0 0
    %886 = vmatpush2.bf16.msra.mxu0 0
    %887 = vmatprep.subr.bf16.mxu0 0
    %888 = vmatpush2.bf16.msra.mxu0 0
    %889 = vmatprep.subr.bf16.mxu0 0
    %890 = vmatpush2.bf16.msra.mxu0 0
    %891 = vmatprep.mubr.bf16.mxu0 0
    %892 = vmatmul.mubr.bf16.gmra.mxu0 %v787
    %v893 = vpop.f32.mrf.mxu0
    %v894 = vadd.f32 %v809, %v893
    %v895 = vpop.f32.mrf.mxu0
    %v896 = vpop.f32.mrf.mxu0
    %v897 = vpop.f32.mrf.mxu0
    %898 = vdwg.mxu0
    %899 = vst [vmem:[#allocation15] sm:$0xff] %v894
    // Predicated region
    $region98: #{tpu_custom_call.1} parent=1 // pred_check
      _
    $region99: #{tpu_custom_call.1} parent=1 // pred_check_branch
      %901 = sbr.rel (0) target = $region101
    $region100: #{tpu_custom_call.1} parent=1 // pred_region
      %s903 = ssub.s32 128, 128
      %904 = vsyncadd [#allocation4], %s903
      %s906 = sshll.u32 [#allocation14], 4
      %s907 = int_to_ptr.vmem [resolvable:$true] %s906
      %909 = dma.vmem_to_hbm [thread:$0]  %s907, 128, %s17, [#allocation4]
    $region101: #{tpu_custom_call.1} parent=1 // pred_fallthru
      _
    // Predicated region
    $region102: #{tpu_custom_call.1} parent=1 // pred_check
      _
    $region103: #{tpu_custom_call.1} parent=1 // pred_check_branch
      %911 = sbr.rel (0) target = $region105
    $region104: #{tpu_custom_call.1} parent=1 // pred_region
      %s913 = ssub.s32 128, 128
      %914 = vsyncadd [#allocation16], %s913
      %s916 = sshll.u32 [#allocation15], 4
      %s917 = int_to_ptr.vmem [resolvable:$true] %s916
      %919 = dma.vmem_to_hbm [thread:$0]  %s917, 128, %s18, [#allocation16]
    $region105: #{tpu_custom_call.1} parent=1 // pred_fallthru
      _
    // Predicated region
    $region106: #{tpu_custom_call.1} parent=1 // pred_check
      _
    $region107: #{tpu_custom_call.1} parent=1 // pred_check_branch
      %921 = sbr.rel (0) target = $region109
    $region108: #{tpu_custom_call.1} parent=1 // pred_region
      %922 = dma.done [#allocation4], 128
    $region109: #{tpu_custom_call.1} parent=1 // pred_fallthru
      _
    // Predicated region
    $region110: #{tpu_custom_call.1} parent=1 // pred_check
      _
    $region111: #{tpu_custom_call.1} parent=1 // pred_check_branch
      %924 = sbr.rel (0) target = $region113
    $region112: #{tpu_custom_call.1} parent=1 // pred_region
      %925 = dma.done [#allocation16], 128
    $region113: #{tpu_custom_call.1} parent=1 // pred_fallthru
      _
    %926 = vsyncpa [#allocation3], 1
    %927 = vsyncpa [#allocation6], 1
    %928 = vsyncpa [#allocation9], 1
    %929 = vsyncpa [#allocation12], 1
    %930 = vsyncpa [#allocation4], 1
    %931 = vsyncpa [#allocation16], 1

</llo_original>
